<compile_context>
chip_gen: v7x
topology: tpu7x:2x2x1
jax: 0.10.0
libtpu: 0.0.40
codegen_flags: <defaults>
</compile_context>

<pallas_src>
import functools

import jax
import jax.numpy as jnp
from jax import lax
from jax.experimental import pallas as pl
from jax.experimental.pallas import tpu as pltpu

_EPS = 1e-12            # F.normalize default eps
_LANES = 128
_SUBLANES = 8
_MAX_TILE_ROWS = 2048   # 2048 rows * 128 lanes * 3 ch * 4 B = 3 MiB per tile (x2 buffers)


def _round_up(x, m):
    return -(-x // m) * m


def _rot6d_to_matrix(d6):
    """(..., 6) -> (..., 3, 3) rotation matrix with rows b1, b2, b3 (pytorch3d)."""
    a1, a2 = d6[..., :3], d6[..., 3:]
    b1 = a1 / jnp.maximum(jnp.linalg.norm(a1, axis=-1, keepdims=True), _EPS)
    b2 = a2 - jnp.sum(b1 * a2, axis=-1, keepdims=True) * b1
    b2 = b2 / jnp.maximum(jnp.linalg.norm(b2, axis=-1, keepdims=True), _EPS)
    b3 = jnp.cross(b1, b2)
    return jnp.stack([b1, b2, b3], axis=-2)


def _plan(B, N):
    """Static tiling plan: (sub_rows, chunks_per_batch, k, C, C_pad, num_tiles).

    A "chunk" is sub_rows*128 consecutive (zero-padded) points of one batch, stored as
    3 channel-planar (sub_rows, 128) slabs.  Each grid tile processes k whole chunks.
    """
    rows_b = max(1, -(-N // _LANES))                       # cdiv(N, 128)
    rows_b_pad = max(_SUBLANES, _round_up(rows_b, _SUBLANES))
    if rows_b_pad <= _MAX_TILE_ROWS:
        chunks_per_batch = 1
        sub_rows = rows_b_pad
        k = max(1, min(B, _MAX_TILE_ROWS // sub_rows))     # whole batches per tile
    else:                                                  # very large N: split a batch
        chunks_per_batch = -(-rows_b_pad // _MAX_TILE_ROWS)
        sub_rows = _round_up(-(-rows_b_pad // chunks_per_batch), _SUBLANES)
        k = 1
    C = B * chunks_per_batch
    C_pad = _round_up(C, k)
    num_tiles = C_pad // k
    return sub_rows, chunks_per_batch, k, C, C_pad, num_tiles


def pack_points(point):
    """(B, N, 3) -> (C_pad*3, sub_rows, 128) planar, lane-dense, zero-padded layout.

    One pad + one transpose pass.  If the model points are constant across training
    steps, call this once and cache the result (it is the dominant HBM cost otherwise).
    """
    B, N, _ = point.shape
    sub_rows, cpb, _, C, C_pad, _ = _plan(B, N)
    ppc = sub_rows * _LANES                      # points per chunk
    n_pad = cpb * ppc
    pt = point.astype(jnp.float32)
    if n_pad != N:
        pt = jnp.pad(pt, ((0, 0), (0, n_pad - N), (0, 0)))   # zeros -> contribute 0
    pt = pt.reshape(B, cpb, ppc, 3)
    pt = jnp.transpose(pt, (0, 1, 3, 2))         # single transpose: channel-planar
    pt = pt.reshape(C * 3, sub_rows, _LANES)
    if C_pad != C:
        pt = jnp.pad(pt, ((0, (C_pad - C) * 3), (0, 0), (0, 0)))
    return pt


def _add_loss_kernel(d_ref, pts_ref, out_ref, *, k, sub_rows):
    """d_ref  : (C_pad*9,) f32 SMEM — row-major D = R(pred)-R(gt) per chunk.
    pts_ref  : (3*k, sub_rows, 128) f32 VMEM — k chunks, channel-planar.
    out_ref  : (8, 128) f32 — per-tile partial sum of point distances."""
    t = pl.program_id(0)

    def body(j, acc):
        base = (t * k + j) * 9                   # chunk coefficient offset in SMEM
        row = j * 3
        px = pts_ref[row + 0]                    # (sub_rows, 128)
        py = pts_ref[row + 1]
        pz = pts_ref[row + 2]
        # (1x3 point) @ (3x3 D), D row-major: out_j = px*D[0,j] + py*D[1,j] + pz*D[2,j]
        dx = px * d_ref[base + 0] + py * d_ref[base + 3] + pz * d_ref[base + 6]
        dy = px * d_ref[base + 1] + py * d_ref[base + 4] + pz * d_ref[base + 7]
        dz = px * d_ref[base + 2] + py * d_ref[base + 5] + pz * d_ref[base + 8]
        dist = jnp.sqrt(dx * dx + dy * dy + dz * dz)   # zero-padded points give 0
        # Fold sublane groups into the (8,128) vector accumulator (pure VPU adds).
        return acc + dist.reshape(sub_rows // _SUBLANES, _SUBLANES, _LANES).sum(axis=0)

    acc = lax.fori_loop(0, k, body, jnp.zeros((_SUBLANES, _LANES), jnp.float32),
                        unroll=min(k, 8))
    out_ref[...] = acc


def add_loss_from_packed(pred, gt, packed, B, N):
    """pred/gt: (B, 6); packed: output of pack_points; returns scalar f32 loss."""
    sub_rows, cpb, k, C, C_pad, num_tiles = _plan(B, N)

    # Hoisted per-batch work (tiny, plain JAX): D_b = R(pred_b) - R(gt_b), row-major.
    diff = (_rot6d_to_matrix(pred.astype(jnp.float32)) -
            _rot6d_to_matrix(gt.astype(jnp.float32))).reshape(B, 9)
    if cpb > 1:
        diff = jnp.repeat(diff, cpb, axis=0)     # per-chunk coefficients
    if C_pad != C:
        diff = jnp.pad(diff, ((0, C_pad - C), (0, 0)))
    diff = diff.reshape(C_pad * 9)               # 1-D SMEM table (no 2-D padding blowup)

    pts_padded = C_pad * sub_rows * _LANES
    partial = pl.pallas_call(
        functools.partial(_add_loss_kernel, k=k, sub_rows=sub_rows),
        out_shape=jax.ShapeDtypeStruct((num_tiles, _SUBLANES, _LANES), jnp.float32),
        grid=(num_tiles,),
        in_specs=[
            pl.BlockSpec(memory_space=pltpu.MemorySpace.SMEM),           # coeff table
            pl.BlockSpec((3 * k, sub_rows, _LANES), lambda t: (t, 0, 0)),  # point tile
        ],
        out_specs=pl.BlockSpec((None, _SUBLANES, _LANES), lambda t: (t, 0, 0)),
        compiler_params=pltpu.CompilerParams(
            dimension_semantics=("parallel",)),   # independent tiles -> both TCs on v7x
        cost_estimate=pl.CostEstimate(
            flops=20 * pts_padded,
            transcendentals=pts_padded,
            bytes_accessed=12 * pts_padded + 36 * C_pad
                           + 4 * num_tiles * _SUBLANES * _LANES),
    )(diff, packed)

    return jnp.sum(partial) / jnp.float32(B * N)


def add_loss_single_r6d_mode(pred, gt, point):
    """pred: (B, 6), gt: (B, 6), point: (B, N, 3)  ->  scalar f32 loss."""
    B, N, _ = point.shape
    packed = pack_points(point)   # cache this across steps when `point` is static
    return add_loss_from_packed(pred, gt, packed, B, N)


# ----------------------- pure-JAX reference (for checking) -----------------------
def _reference(pred, gt, point):
    B, N, _ = point.shape
    point_f = point.astype(jnp.float32).reshape(-1, 3)[:, None, :]
    gt_r = jnp.broadcast_to(gt[:, None, :], (B, N, 6)).reshape(-1, 6)
    pred_r = jnp.broadcast_to(pred[:, None, :], (B, N, 6)).reshape(-1, 6)
    point_gt = jnp.squeeze(point_f @ _rot6d_to_matrix(gt_r), axis=1)
    point_pred = jnp.squeeze(point_f @ _rot6d_to_matrix(pred_r), axis=1)
    return jnp.mean(jnp.linalg.norm(point_pred - point_gt, axis=1), axis=0)


if __name__ == "__main__":
    key = jax.random.PRNGKey(0)
    k1, k2, k3 = jax.random.split(key, 3)

    # Small test 1: B=2 poses, 8 model points each (heavy zero-padding path, k=2).
    B, N = 2, 8
    pred = jax.random.normal(k1, (B, 6), dtype=jnp.float32)
    gt = jax.random.normal(k2, (B, 6), dtype=jnp.float32)
    point = jax.random.normal(k3, (B, N, 3), dtype=jnp.float32)
    loss = jax.block_until_ready(add_loss_single_r6d_mode(pred, gt, point))
    ref = jax.block_until_ready(_reference(pred, gt, point))
    assert jnp.allclose(loss, ref, atol=1e-5, rtol=1e-5), (loss, ref)

    # Small test 2: B=3 poses, 200 points (non-multiple of 128, 3 chunks per tile).
    B2, N2 = 3, 200
    pred2 = jax.random.normal(k1, (B2, 6), dtype=jnp.float32)
    gt2 = jax.random.normal(k2, (B2, 6), dtype=jnp.float32)
    point2 = jax.random.normal(k3, (B2, N2, 3), dtype=jnp.float32)
    loss2 = jax.block_until_ready(add_loss_single_r6d_mode(pred2, gt2, point2))
    ref2 = jax.block_until_ready(_reference(pred2, gt2, point2))
    assert jnp.allclose(loss2, ref2, atol=1e-5, rtol=1e-5), (loss2, ref2)

    print("KERNEL_OK")
</pallas_src>

<mosaic_0001>
module attributes {stable_mosaic.version = 11 : i64} {
  func.func @_add_loss_kernel(%arg0: i32, %arg1: memref<18xf32, #tpu.memory_space<smem>>, %arg2: memref<6x8x128xf32, #tpu.memory_space<vmem>>, %arg3: memref<1x8x128xf32, #tpu.memory_space<vmem>>) attributes {dimension_semantics = [#tpu.dimension_semantics<parallel>], iteration_bounds = array<i64: 1>, scalar_prefetch = 0 : i64, scratch_operands = 0 : i64, tpu.core_type = #tpu.core_type<tc>, window_params = [{transform_indices = @transform_0, window_bounds = array<i64: 18>}, {transform_indices = @transform_1, window_bounds = array<i64: 6, 8, 128>}, {transform_indices = @transform_2, window_bounds = array<i64: 1, 8, 128>}]} {
    %cst = arith.constant 0.000000e+00 : f32
    %0 = vector.broadcast %cst : f32 to vector<8x128xf32>
    %c0_i32 = arith.constant 0 : i32
    %c2_i32 = arith.constant 2 : i32
    %1 = arith.muli %arg0, %c2_i32 : i32
    %2 = arith.addi %1, %c0_i32 : i32
    %c9_i32 = arith.constant 9 : i32
    %3 = arith.muli %2, %c9_i32 : i32
    %c3_i32 = arith.constant 3 : i32
    %4 = arith.muli %c0_i32, %c3_i32 : i32
    %c0_i32_0 = arith.constant 0 : i32
    %5 = arith.addi %4, %c0_i32_0 : i32
    %6 = arith.index_cast %5 : i32 to index
    %c0 = arith.constant 0 : index
    %c0_1 = arith.constant 0 : index
    %7 = vector.load %arg2[%6, %c0, %c0_1] : memref<6x8x128xf32, #tpu.memory_space<vmem>>, vector<1x8x128xf32>
    %8 = vector.shape_cast %7 : vector<1x8x128xf32> to vector<8x128xf32>
    %c1_i32 = arith.constant 1 : i32
    %9 = arith.addi %4, %c1_i32 : i32
    %10 = arith.index_cast %9 : i32 to index
    %c0_2 = arith.constant 0 : index
    %c0_3 = arith.constant 0 : index
    %11 = vector.load %arg2[%10, %c0_2, %c0_3] : memref<6x8x128xf32, #tpu.memory_space<vmem>>, vector<1x8x128xf32>
    %12 = vector.shape_cast %11 : vector<1x8x128xf32> to vector<8x128xf32>
    %c2_i32_4 = arith.constant 2 : i32
    %13 = arith.addi %4, %c2_i32_4 : i32
    %14 = arith.index_cast %13 : i32 to index
    %c0_5 = arith.constant 0 : index
    %c0_6 = arith.constant 0 : index
    %15 = vector.load %arg2[%14, %c0_5, %c0_6] : memref<6x8x128xf32, #tpu.memory_space<vmem>>, vector<1x8x128xf32>
    %16 = vector.shape_cast %15 : vector<1x8x128xf32> to vector<8x128xf32>
    %c0_i32_7 = arith.constant 0 : i32
    %17 = arith.addi %3, %c0_i32_7 : i32
    %18 = arith.index_cast %17 : i32 to index
    %19 = memref.load %arg1[%18] : memref<18xf32, #tpu.memory_space<smem>>
    %20 = vector.broadcast %19 : f32 to vector<8x128xf32>
    %21 = arith.mulf %8, %20 : vector<8x128xf32>
    %c3_i32_8 = arith.constant 3 : i32
    %22 = arith.addi %3, %c3_i32_8 : i32
    %23 = arith.index_cast %22 : i32 to index
    %24 = memref.load %arg1[%23] : memref<18xf32, #tpu.memory_space<smem>>
    %25 = vector.broadcast %24 : f32 to vector<8x128xf32>
    %26 = arith.mulf %12, %25 : vector<8x128xf32>
    %27 = arith.addf %21, %26 : vector<8x128xf32>
    %c6_i32 = arith.constant 6 : i32
    %28 = arith.addi %3, %c6_i32 : i32
    %29 = arith.index_cast %28 : i32 to index
    %30 = memref.load %arg1[%29] : memref<18xf32, #tpu.memory_space<smem>>
    %31 = vector.broadcast %30 : f32 to vector<8x128xf32>
    %32 = arith.mulf %16, %31 : vector<8x128xf32>
    %33 = arith.addf %27, %32 : vector<8x128xf32>
    %c1_i32_9 = arith.constant 1 : i32
    %34 = arith.addi %3, %c1_i32_9 : i32
    %35 = arith.index_cast %34 : i32 to index
    %36 = memref.load %arg1[%35] : memref<18xf32, #tpu.memory_space<smem>>
    %37 = vector.broadcast %36 : f32 to vector<8x128xf32>
    %38 = arith.mulf %8, %37 : vector<8x128xf32>
    %c4_i32 = arith.constant 4 : i32
    %39 = arith.addi %3, %c4_i32 : i32
    %40 = arith.index_cast %39 : i32 to index
    %41 = memref.load %arg1[%40] : memref<18xf32, #tpu.memory_space<smem>>
    %42 = vector.broadcast %41 : f32 to vector<8x128xf32>
    %43 = arith.mulf %12, %42 : vector<8x128xf32>
    %44 = arith.addf %38, %43 : vector<8x128xf32>
    %c7_i32 = arith.constant 7 : i32
    %45 = arith.addi %3, %c7_i32 : i32
    %46 = arith.index_cast %45 : i32 to index
    %47 = memref.load %arg1[%46] : memref<18xf32, #tpu.memory_space<smem>>
    %48 = vector.broadcast %47 : f32 to vector<8x128xf32>
    %49 = arith.mulf %16, %48 : vector<8x128xf32>
    %50 = arith.addf %44, %49 : vector<8x128xf32>
    %c2_i32_10 = arith.constant 2 : i32
    %51 = arith.addi %3, %c2_i32_10 : i32
    %52 = arith.index_cast %51 : i32 to index
    %53 = memref.load %arg1[%52] : memref<18xf32, #tpu.memory_space<smem>>
    %54 = vector.broadcast %53 : f32 to vector<8x128xf32>
    %55 = arith.mulf %8, %54 : vector<8x128xf32>
    %c5_i32 = arith.constant 5 : i32
    %56 = arith.addi %3, %c5_i32 : i32
    %57 = arith.index_cast %56 : i32 to index
    %58 = memref.load %arg1[%57] : memref<18xf32, #tpu.memory_space<smem>>
    %59 = vector.broadcast %58 : f32 to vector<8x128xf32>
    %60 = arith.mulf %12, %59 : vector<8x128xf32>
    %61 = arith.addf %55, %60 : vector<8x128xf32>
    %c8_i32 = arith.constant 8 : i32
    %62 = arith.addi %3, %c8_i32 : i32
    %63 = arith.index_cast %62 : i32 to index
    %64 = memref.load %arg1[%63] : memref<18xf32, #tpu.memory_space<smem>>
    %65 = vector.broadcast %64 : f32 to vector<8x128xf32>
    %66 = arith.mulf %16, %65 : vector<8x128xf32>
    %67 = arith.addf %61, %66 : vector<8x128xf32>
    %68 = arith.mulf %33, %33 : vector<8x128xf32>
    %69 = arith.mulf %50, %50 : vector<8x128xf32>
    %70 = arith.addf %68, %69 : vector<8x128xf32>
    %71 = arith.mulf %67, %67 : vector<8x128xf32>
    %72 = arith.addf %70, %71 : vector<8x128xf32>
    %73 = math.sqrt %72 : vector<8x128xf32>
    %74 = vector.shape_cast %73 : vector<8x128xf32> to vector<1x8x128xf32>
    %cst_11 = arith.constant dense<0.000000e+00> : vector<8x128xf32>
    %75 = vector.multi_reduction <add>, %74, %cst_11 [0] : vector<1x8x128xf32> to vector<8x128xf32>
    %76 = arith.addf %0, %75 : vector<8x128xf32>
    %c1_i32_12 = arith.constant 1 : i32
    %c2_i32_13 = arith.constant 2 : i32
    %77 = arith.muli %arg0, %c2_i32_13 : i32
    %78 = arith.addi %77, %c1_i32_12 : i32
    %c9_i32_14 = arith.constant 9 : i32
    %79 = arith.muli %78, %c9_i32_14 : i32
    %c3_i32_15 = arith.constant 3 : i32
    %80 = arith.muli %c1_i32_12, %c3_i32_15 : i32
    %c0_i32_16 = arith.constant 0 : i32
    %81 = arith.addi %80, %c0_i32_16 : i32
    %82 = arith.index_cast %81 : i32 to index
    %c0_17 = arith.constant 0 : index
    %c0_18 = arith.constant 0 : index
    %83 = vector.load %arg2[%82, %c0_17, %c0_18] : memref<6x8x128xf32, #tpu.memory_space<vmem>>, vector<1x8x128xf32>
    %84 = vector.shape_cast %83 : vector<1x8x128xf32> to vector<8x128xf32>
    %c1_i32_19 = arith.constant 1 : i32
    %85 = arith.addi %80, %c1_i32_19 : i32
    %86 = arith.index_cast %85 : i32 to index
    %c0_20 = arith.constant 0 : index
    %c0_21 = arith.constant 0 : index
    %87 = vector.load %arg2[%86, %c0_20, %c0_21] : memref<6x8x128xf32, #tpu.memory_space<vmem>>, vector<1x8x128xf32>
    %88 = vector.shape_cast %87 : vector<1x8x128xf32> to vector<8x128xf32>
    %c2_i32_22 = arith.constant 2 : i32
    %89 = arith.addi %80, %c2_i32_22 : i32
    %90 = arith.index_cast %89 : i32 to index
    %c0_23 = arith.constant 0 : index
    %c0_24 = arith.constant 0 : index
    %91 = vector.load %arg2[%90, %c0_23, %c0_24] : memref<6x8x128xf32, #tpu.memory_space<vmem>>, vector<1x8x128xf32>
    %92 = vector.shape_cast %91 : vector<1x8x128xf32> to vector<8x128xf32>
    %c0_i32_25 = arith.constant 0 : i32
    %93 = arith.addi %79, %c0_i32_25 : i32
    %94 = arith.index_cast %93 : i32 to index
    %95 = memref.load %arg1[%94] : memref<18xf32, #tpu.memory_space<smem>>
    %96 = vector.broadcast %95 : f32 to vector<8x128xf32>
    %97 = arith.mulf %84, %96 : vector<8x128xf32>
    %c3_i32_26 = arith.constant 3 : i32
    %98 = arith.addi %79, %c3_i32_26 : i32
    %99 = arith.index_cast %98 : i32 to index
    %100 = memref.load %arg1[%99] : memref<18xf32, #tpu.memory_space<smem>>
    %101 = vector.broadcast %100 : f32 to vector<8x128xf32>
    %102 = arith.mulf %88, %101 : vector<8x128xf32>
    %103 = arith.addf %97, %102 : vector<8x128xf32>
    %c6_i32_27 = arith.constant 6 : i32
    %104 = arith.addi %79, %c6_i32_27 : i32
    %105 = arith.index_cast %104 : i32 to index
    %106 = memref.load %arg1[%105] : memref<18xf32, #tpu.memory_space<smem>>
    %107 = vector.broadcast %106 : f32 to vector<8x128xf32>
    %108 = arith.mulf %92, %107 : vector<8x128xf32>
    %109 = arith.addf %103, %108 : vector<8x128xf32>
    %c1_i32_28 = arith.constant 1 : i32
    %110 = arith.addi %79, %c1_i32_28 : i32
    %111 = arith.index_cast %110 : i32 to index
    %112 = memref.load %arg1[%111] : memref<18xf32, #tpu.memory_space<smem>>
    %113 = vector.broadcast %112 : f32 to vector<8x128xf32>
    %114 = arith.mulf %84, %113 : vector<8x128xf32>
    %c4_i32_29 = arith.constant 4 : i32
    %115 = arith.addi %79, %c4_i32_29 : i32
    %116 = arith.index_cast %115 : i32 to index
    %117 = memref.load %arg1[%116] : memref<18xf32, #tpu.memory_space<smem>>
    %118 = vector.broadcast %117 : f32 to vector<8x128xf32>
    %119 = arith.mulf %88, %118 : vector<8x128xf32>
    %120 = arith.addf %114, %119 : vector<8x128xf32>
    %c7_i32_30 = arith.constant 7 : i32
    %121 = arith.addi %79, %c7_i32_30 : i32
    %122 = arith.index_cast %121 : i32 to index
    %123 = memref.load %arg1[%122] : memref<18xf32, #tpu.memory_space<smem>>
    %124 = vector.broadcast %123 : f32 to vector<8x128xf32>
    %125 = arith.mulf %92, %124 : vector<8x128xf32>
    %126 = arith.addf %120, %125 : vector<8x128xf32>
    %c2_i32_31 = arith.constant 2 : i32
    %127 = arith.addi %79, %c2_i32_31 : i32
    %128 = arith.index_cast %127 : i32 to index
    %129 = memref.load %arg1[%128] : memref<18xf32, #tpu.memory_space<smem>>
    %130 = vector.broadcast %129 : f32 to vector<8x128xf32>
    %131 = arith.mulf %84, %130 : vector<8x128xf32>
    %c5_i32_32 = arith.constant 5 : i32
    %132 = arith.addi %79, %c5_i32_32 : i32
    %133 = arith.index_cast %132 : i32 to index
    %134 = memref.load %arg1[%133] : memref<18xf32, #tpu.memory_space<smem>>
    %135 = vector.broadcast %134 : f32 to vector<8x128xf32>
    %136 = arith.mulf %88, %135 : vector<8x128xf32>
    %137 = arith.addf %131, %136 : vector<8x128xf32>
    %c8_i32_33 = arith.constant 8 : i32
    %138 = arith.addi %79, %c8_i32_33 : i32
    %139 = arith.index_cast %138 : i32 to index
    %140 = memref.load %arg1[%139] : memref<18xf32, #tpu.memory_space<smem>>
    %141 = vector.broadcast %140 : f32 to vector<8x128xf32>
    %142 = arith.mulf %92, %141 : vector<8x128xf32>
    %143 = arith.addf %137, %142 : vector<8x128xf32>
    %144 = arith.mulf %109, %109 : vector<8x128xf32>
    %145 = arith.mulf %126, %126 : vector<8x128xf32>
    %146 = arith.addf %144, %145 : vector<8x128xf32>
    %147 = arith.mulf %143, %143 : vector<8x128xf32>
    %148 = arith.addf %146, %147 : vector<8x128xf32>
    %149 = math.sqrt %148 : vector<8x128xf32>
    %150 = vector.shape_cast %149 : vector<8x128xf32> to vector<1x8x128xf32>
    %cst_34 = arith.constant dense<0.000000e+00> : vector<8x128xf32>
    %151 = vector.multi_reduction <add>, %150, %cst_34 [0] : vector<1x8x128xf32> to vector<8x128xf32>
    %152 = arith.addf %76, %151 : vector<8x128xf32>
    %c2_i32_35 = arith.constant 2 : i32
    %c0_36 = arith.constant 0 : index
    %c0_37 = arith.constant 0 : index
    %c0_38 = arith.constant 0 : index
    %153 = vector.load %arg3[%c0_36, %c0_37, %c0_38] : memref<1x8x128xf32, #tpu.memory_space<vmem>>, vector<1x8x128xf32>
    %154 = vector.shape_cast %153 : vector<1x8x128xf32> to vector<8x128xf32>
    %155 = vector.shape_cast %152 : vector<8x128xf32> to vector<1x8x128xf32>
    tpu.vector_store %arg3[%c0_36, %c0_37, %c0_38], %155 {strides = array<i32>} : memref<1x8x128xf32, #tpu.memory_space<vmem>>, vector<1x8x128xf32>,
    return
  }
  func.func @transform_0(%arg0: i32) -> i32 {
    %c0_i32 = arith.constant 0 : i32
    %c0_i32_0 = arith.constant 0 : i32
    return %c0_i32 : i32
  }
  func.func @transform_1(%arg0: i32) -> (i32, i32, i32) {
    %c0_i32 = arith.constant 0 : i32
    %c0_i32_0 = arith.constant 0 : i32
    %c0_i32_1 = arith.constant 0 : i32
    return %arg0, %c0_i32, %c0_i32_0 : i32, i32, i32
  }
  func.func @transform_2(%arg0: i32) -> (i32, i32, i32) {
    %c0_i32 = arith.constant 0 : i32
    %c0_i32_0 = arith.constant 0 : i32
    %c0_i32_1 = arith.constant 0 : i32
    return %arg0, %c0_i32, %c0_i32_0 : i32, i32, i32
  }
}

</mosaic_0001>

<llo_original>
// kernel: tpu_custom_call.1
$region0: #{tpu_custom_call.1}
  #allocation0 [shape = 'u32[]', space=smem, size = 0x4, offset = 0x4, fixed_abs, tag = 'smem constant byte address 0x4 - core index']
  #allocation1 [shape = 'u32[144,128]{1,0:T(1,128)}', space=vmem, size = 0x12000, scoped, tag = 'internal scratch']
  %s0 = inlined_call_operand.hbm [shape: f32[18], index: 0, kind: input, shape index: {}]
  %s1 = inlined_call_operand.hbm [shape: f32[6,8,128], index: 1, kind: input, shape index: {}]
  %s2 = inlined_call_operand.hbm [shape: f32[1,8,128], index: 2, kind: output, shape index: {}]
  %s3 = sld [smem:[#allocation0]]
  $region26: #{tpu_custom_call.1} parent=0
    _
  %s5 = ssub.s32 1, %s3
  %s6 = scalar_select 0, %s5, %s3
  $region1: #{tpu_custom_call.1} parent=0
    #allocation2 [shape = 'u8[512]{0}', space=smem, size = 0x200, scoped, tag = 'input window, operand 0, single buffered']
    #allocation3 [shape = 's32[1]{0}', space=sflag, size = 0x4, scoped, tag = 'scoped memory for tpu_custom_call.1']
    #allocation4 [shape = 's32[1]{0}', space=sflag, size = 0x4, scoped, tag = 'scoped memory for tpu_custom_call.1']
    #allocation5 [shape = 's32[1]{0}', space=sflag, size = 0x4, scoped, tag = 'scoped memory for tpu_custom_call.1']
    #allocation6 [shape = 'u8[24576]{0}', space=vmem, size = 0x6000, scoped, tag = 'input window, operand 1, single buffered']
    #allocation7 [shape = 'u8[4096]{0}', space=vmem, size = 0x1000, scoped, tag = 'output window, operand 0, single buffered']
    %7 = vsyncpa [#allocation5], 0
    %8 = vsyncpa [#allocation3], 0
    %9 = vsyncpa [#allocation4], 0
    // Predicated region
    $region2: #{tpu_custom_call.1} parent=1 // pred_check
      _
    $region3: #{tpu_custom_call.1} parent=1 // pred_check_branch
      %11 = sbr.rel (0) target = $region5
    $region4: #{tpu_custom_call.1} parent=1 // pred_region
      %s13 = ssub.s32 16, 16
      %14 = vsyncadd [#allocation5], %s13
      %17 = dma.hbm_to_smem %s0, 16, [#allocation2], [#allocation5]
    $region5: #{tpu_custom_call.1} parent=1 // pred_fallthru
      _
    // Predicated region
    $region6: #{tpu_custom_call.1} parent=1 // pred_check
      _
    $region7: #{tpu_custom_call.1} parent=1 // pred_check_branch
      %19 = sbr.rel (0) target = $region9
    $region8: #{tpu_custom_call.1} parent=1 // pred_region
      %s21 = ssub.s32 768, 768
      %22 = vsyncadd [#allocation3], %s21
      %s23 = sshll.u32 [#allocation6], 4
      %s24 = int_to_ptr.vmem [resolvable:$true] %s23
      %29 = dma.hbm_to_vmem [thread:$0]  %s1, 768, %s24, [#allocation3], 128, 128, 8
    $region9: #{tpu_custom_call.1} parent=1 // pred_fallthru
      _
    // Predicated region
    $region10: #{tpu_custom_call.1} parent=1 // pred_check
      _
    $region11: #{tpu_custom_call.1} parent=1 // pred_check_branch
      %31 = sbr.rel (0) target = $region13
    $region12: #{tpu_custom_call.1} parent=1 // pred_region
      %32 = dma.done [#allocation5], 16
    $region13: #{tpu_custom_call.1} parent=1 // pred_fallthru
      _
    // Predicated region
    $region14: #{tpu_custom_call.1} parent=1 // pred_check
      _
    $region15: #{tpu_custom_call.1} parent=1 // pred_check_branch
      %34 = sbr.rel (0) target = $region17
    $region16: #{tpu_custom_call.1} parent=1 // pred_region
      %35 = dma.done [#allocation3], 768
    $region17: #{tpu_custom_call.1} parent=1 // pred_fallthru
      _
    %36 = sfence
    %s37 = smul.u32 0, 18
    %v38 = vld [vmem:[#allocation6] sm:$0xff]
    %s39 = scalar_lea.vmem [#allocation6], 8
    %v40 = vld [vmem:[%s39] sm:$0xff]
    %s41 = scalar_lea.vmem [#allocation6], 16
    %v42 = vld [vmem:[%s41] sm:$0xff]
    %s43 = sld [smem:[#allocation2 + %s37]]
    %v44 = vstv %s43
    %v45 = vmul.f32 %v38, %v44
    %s46 = sadd.s32 %s37, 3
    %s47 = sld [smem:[#allocation2 + %s46]]
    %v48 = vstv %s47
    %v49 = vmul.f32 %v40, %v48
    %v50 = vadd.f32 %v45, %v49
    %s51 = sadd.s32 %s37, 6
    %s52 = sld [smem:[#allocation2 + %s51]]
    %v53 = vstv %s52
    %v54 = vmul.f32 %v42, %v53
    %v55 = vadd.f32 %v50, %v54
    %s56 = sadd.s32 %s37, 1
    %s57 = sld [smem:[#allocation2 + %s56]]
    %v58 = vstv %s57
    %v59 = vmul.f32 %v38, %v58
    %s60 = sadd.s32 %s37, 4
    %s61 = sld [smem:[#allocation2 + %s60]]
    %v62 = vstv %s61
    %v63 = vmul.f32 %v40, %v62
    %v64 = vadd.f32 %v59, %v63
    %s65 = sadd.s32 %s37, 7
    %s66 = sld [smem:[#allocation2 + %s65]]
    %v67 = vstv %s66
    %v68 = vmul.f32 %v42, %v67
    %v69 = vadd.f32 %v64, %v68
    %s70 = sadd.s32 %s37, 2
    %s71 = sld [smem:[#allocation2 + %s70]]
    %v72 = vstv %s71
    %v73 = vmul.f32 %v38, %v72
    %s74 = sadd.s32 %s37, 5
    %s75 = sld [smem:[#allocation2 + %s74]]
    %v76 = vstv %s75
    %v77 = vmul.f32 %v40, %v76
    %v78 = vadd.f32 %v73, %v77
    %s79 = sadd.s32 %s37, 8
    %s80 = sld [smem:[#allocation2 + %s79]]
    %v81 = vstv %s80
    %v82 = vmul.f32 %v42, %v81
    %v83 = vadd.f32 %v78, %v82
    %v84 = vmul.f32 %v55, %v55
    %v85 = vmul.f32 %v69, %v69
    %v86 = vadd.f32 %v84, %v85
    %v87 = vmul.f32 %v83, %v83
    %v88 = vadd.f32 %v86, %v87
    %v89 = vrsqrt.pop %v88
    %v90 = vmul.f32 %v88, %v89
    %vm91 = vcmp.eq.f32.partialorder %v88, inf
    %v92 = vsel %vm91, %v88, %v90
    %vm93 = vcmp.eq.f32.partialorder %v88, 0.0
    %v94 = vand.u32 %v88, 2147483648
    %v95 = vsel %vm93, %v94, %v92
    %v96 = vadd.f32 %v95, 0.0
    %v97 = vadd.f32 %v96, 0.0
    %s98 = smul.u32 0, 2
    %s99 = sadd.s32 %s98, 1
    %s100 = smul.u32 %s99, 9
    %s101 = scalar_lea.vmem [#allocation6], 24
    %v102 = vld [vmem:[%s101] sm:$0xff]
    %s103 = scalar_lea.vmem [#allocation6], 32
    %v104 = vld [vmem:[%s103] sm:$0xff]
    %s105 = scalar_lea.vmem [#allocation6], 40
    %v106 = vld [vmem:[%s105] sm:$0xff]
    %s107 = sld [smem:[#allocation2 + %s100]]
    %v108 = vstv %s107
    %v109 = vmul.f32 %v102, %v108
    %s110 = sadd.s32 %s100, 3
    %s111 = sld [smem:[#allocation2 + %s110]]
    %v112 = vstv %s111
    %v113 = vmul.f32 %v104, %v112
    %v114 = vadd.f32 %v109, %v113
    %s115 = sadd.s32 %s100, 6
    %s116 = sld [smem:[#allocation2 + %s115]]
    %v117 = vstv %s116
    %v118 = vmul.f32 %v106, %v117
    %v119 = vadd.f32 %v114, %v118
    %s120 = sadd.s32 %s100, 1
    %s121 = sld [smem:[#allocation2 + %s120]]
    %v122 = vstv %s121
    %v123 = vmul.f32 %v102, %v122
    %s124 = sadd.s32 %s100, 4
    %s125 = sld [smem:[#allocation2 + %s124]]
    %v126 = vstv %s125
    %v127 = vmul.f32 %v104, %v126
    %v128 = vadd.f32 %v123, %v127
    %s129 = sadd.s32 %s100, 7
    %s130 = sld [smem:[#allocation2 + %s129]]
    %v131 = vstv %s130
    %v132 = vmul.f32 %v106, %v131
    %v133 = vadd.f32 %v128, %v132
    %s134 = sadd.s32 %s100, 2
    %s135 = sld [smem:[#allocation2 + %s134]]
    %v136 = vstv %s135
    %v137 = vmul.f32 %v102, %v136
    %s138 = sadd.s32 %s100, 5
    %s139 = sld [smem:[#allocation2 + %s138]]
    %v140 = vstv %s139
    %v141 = vmul.f32 %v104, %v140
    %v142 = vadd.f32 %v137, %v141
    %s143 = sadd.s32 %s100, 8
    %s144 = sld [smem:[#allocation2 + %s143]]
    %v145 = vstv %s144
    %v146 = vmul.f32 %v106, %v145
    %v147 = vadd.f32 %v142, %v146
    %v148 = vmul.f32 %v119, %v119
    %v149 = vmul.f32 %v133, %v133
    %v150 = vadd.f32 %v148, %v149
    %v151 = vmul.f32 %v147, %v147
    %v152 = vadd.f32 %v150, %v151
    %v153 = vrsqrt.pop %v152
    %v154 = vmul.f32 %v152, %v153
    %vm155 = vcmp.eq.f32.partialorder %v152, inf
    %v156 = vsel %vm155, %v152, %v154
    %vm157 = vcmp.eq.f32.partialorder %v152, 0.0
    %v158 = vand.u32 %v152, 2147483648
    %v159 = vsel %vm157, %v158, %v156
    %v160 = vadd.f32 %v159, 0.0
    %v161 = vadd.f32 %v97, %v160
    %162 = vst [vmem:[#allocation7] sm:$0xff] %v161
    // Predicated region
    $region18: #{tpu_custom_call.1} parent=1 // pred_check
      _
    $region19: #{tpu_custom_call.1} parent=1 // pred_check_branch
      %164 = sbr.rel (0) target = $region21
    $region20: #{tpu_custom_call.1} parent=1 // pred_region
      %s166 = ssub.s32 128, 128
      %167 = vsyncadd [#allocation4], %s166
      %s169 = sshll.u32 [#allocation7], 4
      %s170 = int_to_ptr.vmem [resolvable:$true] %s169
      %172 = dma.vmem_to_hbm [thread:$0]  %s170, 128, %s2, [#allocation4]
    $region21: #{tpu_custom_call.1} parent=1 // pred_fallthru
      _
    // Predicated region
    $region22: #{tpu_custom_call.1} parent=1 // pred_check
      _
    $region23: #{tpu_custom_call.1} parent=1 // pred_check_branch
      %174 = sbr.rel (0) target = $region25
    $region24: #{tpu_custom_call.1} parent=1 // pred_region
      %175 = dma.done [#allocation4], 128
    $region25: #{tpu_custom_call.1} parent=1 // pred_fallthru
      _
    %176 = vsyncpa [#allocation3], 1
    %177 = vsyncpa [#allocation4], 1
    %178 = vsyncpa [#allocation5], 1

</llo_original>
